<compile_context>
chip_gen: v6e
topology: v6e:2x2x1
jax: 0.10.0
libtpu: 0.0.40
codegen_flags: <defaults>
</compile_context>

<pallas_src>
import functools
import math

import jax
import jax.numpy as jnp
from jax.experimental import pallas as pl
from jax.experimental.pallas import tpu as pltpu

# ----------------------------- model config (small, synthetic) ---------------
PATCH = 8
DIM = 256         # emb_dim, multiple of 128 (real VC1-base would be 768)
HEADS = 2         # head_dim = 128 -> all per-head slices are lane aligned
MLP = 512         # multiple of 128
DEPTH = 2

IMAGENET_MEAN = jnp.array([0.485, 0.456, 0.406], jnp.float32)
IMAGENET_STD = jnp.array([0.229, 0.224, 0.225], jnp.float32)
LN_EPS = 1e-6     # timm ViT (VC1 backbone) uses LayerNorm eps=1e-6


# ----------------------------- in-kernel helpers -----------------------------
def _layer_norm(x, w, b, eps=LN_EPS):
    mu = jnp.mean(x, axis=-1, keepdims=True)
    var = jnp.mean((x - mu) ** 2, axis=-1, keepdims=True)
    return (x - mu) * jax.lax.rsqrt(var + eps) * w + b


def _gelu(x):
    # TODO(synk): PyTorch nn.GELU default is the exact erf form; tanh approx here.
    c = math.sqrt(2.0 / math.pi)
    return 0.5 * x * (1.0 + jnp.tanh(c * (x + 0.044715 * x * x * x)))


# ----------------------------- Pallas kernels --------------------------------
def patch_embed_kernel(x_ref, mean_ref, istd_ref, w_ref, b_ref, cls_ref,
                       pos_ref, o_ref):
    # x_ref: (1, Np, P) raw patches of one image.
    # Fused: Normalize ("transforms") -> bf16 projection -> CLS prepend -> +pos.
    x = (x_ref[0] - mean_ref[...]) * istd_ref[...]                     # (Np, P) f32
    proj = jnp.dot(x.astype(jnp.bfloat16), w_ref[...],
                   preferred_element_type=jnp.float32) + b_ref[...]    # (Np, D) f32
    tok = jnp.concatenate([cls_ref[...], proj], axis=0) + pos_ref[0]   # (N, D)
    o_ref[0] = tok


def blocks_kernel(x_ref,
                  ln1w_ref, ln1b_ref, qkvw_ref, qkvb_ref, projw_ref, projb_ref,
                  ln2w_ref, ln2b_ref, fc1w_ref, fc1b_ref, fc2w_ref, fc2b_ref,
                  lnfw_ref, lnfb_ref,
                  o_ref, acc_ref, *, dim, num_heads):
    """One grid step = one transformer block of one batch element.

    grid = (B, DEPTH); activations live in the VMEM scratch `acc_ref` across
    the depth axis; only layer l's weights are DMA'd per step.  The final
    LayerNorm + CLS readout happens on the last depth step.
    """
    l = pl.program_id(1)

    @pl.when(l == 0)
    def _():
        acc_ref[...] = x_ref[0]

    x = acc_ref[...]                        # (N, D) resident f32 activations
    hd = dim // num_heads
    scale = 1.0 / math.sqrt(hd)

    # --- attention (pre-norm) ---
    h = _layer_norm(x, ln1w_ref[0], ln1b_ref[0]).astype(jnp.bfloat16)
    qkv = jnp.dot(h, qkvw_ref[0], preferred_element_type=jnp.float32) + qkvb_ref[0]
    # splits fall on multiples of 128 lanes -> free
    q = qkv[:, 0 * dim:1 * dim]
    k = qkv[:, 1 * dim:2 * dim]
    v = qkv[:, 2 * dim:3 * dim]

    # head_dim is a multiple of 128: lane-aligned slices stacked into a
    # head-batched layout, then all heads contracted in one einsum pair.
    qh = jnp.stack([q[:, i * hd:(i + 1) * hd] for i in range(num_heads)], 0)
    kh = jnp.stack([k[:, i * hd:(i + 1) * hd] for i in range(num_heads)], 0)
    vh = jnp.stack([v[:, i * hd:(i + 1) * hd] for i in range(num_heads)], 0)

    s = jnp.einsum("hnd,hmd->hnm",
                   qh.astype(jnp.bfloat16), kh.astype(jnp.bfloat16),
                   preferred_element_type=jnp.float32) * scale
    s = s - jnp.max(s, axis=-1, keepdims=True)
    p = jnp.exp(s)
    p = p * pl.reciprocal(jnp.sum(p, axis=-1, keepdims=True), approx=True)

    o = jnp.einsum("hnm,hmd->hnd",
                   p.astype(jnp.bfloat16), vh.astype(jnp.bfloat16),
                   preferred_element_type=jnp.float32)
    attn = jnp.concatenate([o[i] for i in range(num_heads)], axis=-1)   # (N, D)
    attn = jnp.dot(attn.astype(jnp.bfloat16), projw_ref[0],
                   preferred_element_type=jnp.float32) + projb_ref[0]
    x = x + attn

    # --- MLP ---
    h2 = _layer_norm(x, ln2w_ref[0], ln2b_ref[0]).astype(jnp.bfloat16)
    m = jnp.dot(h2, fc1w_ref[0], preferred_element_type=jnp.float32) + fc1b_ref[0]
    m = _gelu(m)
    m = jnp.dot(m.astype(jnp.bfloat16), fc2w_ref[0],
                preferred_element_type=jnp.float32) + fc2b_ref[0]
    x = x + m

    acc_ref[...] = x

    # final LayerNorm of the CLS token only; only the (1, D) CLS row leaves VMEM.
    @pl.when(l == pl.num_programs(1) - 1)
    def _():
        o_ref[0] = _layer_norm(x[0:1, :], lnfw_ref[...], lnfb_ref[...])


# ----------------------------- glue / wrapper --------------------------------
WEIGHT_NAMES = ("ln1_w", "ln1_b", "qkv_w", "qkv_b", "proj_w", "proj_b",
                "ln2_w", "ln2_b", "fc1_w", "fc1_b", "fc2_w", "fc2_b")


def patchify(x, patch):
    B, C, H, W = x.shape
    gh, gw = H // patch, W // patch
    x = x.reshape(B, C, gh, patch, gw, patch)
    x = x.transpose(0, 2, 4, 1, 3, 5)       # (B, gh, gw, C, ph, pw): Conv2d order
    return x.reshape(B, gh * gw, C * patch * patch)


def init_params(key, *, C, patch, dim, depth, heads, mlp, n_tokens):
    P = C * patch * patch
    keys = jax.random.split(key, 3 + depth)

    def nrm(k, shape, scale=0.02, dtype=jnp.bfloat16):
        return (scale * jax.random.normal(k, shape)).astype(dtype)

    params = dict(
        patch_w=nrm(keys[0], (P, dim)),                      # bf16 (MXU operand)
        patch_b=jnp.zeros((1, dim), jnp.float32),
        cls=nrm(keys[1], (1, dim), dtype=jnp.float32),
        pos=nrm(keys[2], (1, n_tokens, dim), dtype=jnp.float32),
        ln_f_w=jnp.ones((1, dim), jnp.float32),
        ln_f_b=jnp.zeros((1, dim), jnp.float32),
        blocks=[],
    )
    for i in range(depth):
        bk = jax.random.split(keys[3 + i], 4)
        params["blocks"].append(dict(
            ln1_w=jnp.ones((1, dim), jnp.float32),
            ln1_b=jnp.zeros((1, dim), jnp.float32),
            qkv_w=nrm(bk[0], (dim, 3 * dim)),
            qkv_b=jnp.zeros((1, 3 * dim), jnp.float32),
            proj_w=nrm(bk[1], (dim, dim)),
            proj_b=jnp.zeros((1, dim), jnp.float32),
            ln2_w=jnp.ones((1, dim), jnp.float32),
            ln2_b=jnp.zeros((1, dim), jnp.float32),
            fc1_w=nrm(bk[2], (dim, mlp)),
            fc1_b=jnp.zeros((1, mlp), jnp.float32),
            fc2_w=nrm(bk[3], (mlp, dim)),
            fc2_b=jnp.zeros((1, dim), jnp.float32),
        ))
    return params


def vc1_forward(x, params, *, patch=PATCH, dim=DIM, heads=HEADS):
    """x: (B, C, H, W) raw images in [0,1]. Returns (B, 1, emb_dim)."""
    B, C, H, W = x.shape
    Np = (H // patch) * (W // patch)
    N = Np + 1
    P = C * patch * patch
    depth = len(params["blocks"])

    # "transforms" (Normalize), broadcast to the flattened (C, ph, pw) layout;
    # fused into the patch-embed kernel.
    mean = jnp.repeat(IMAGENET_MEAN[:C], patch * patch).reshape(1, P)
    inv_std = (1.0 / jnp.repeat(IMAGENET_STD[:C], patch * patch)).reshape(1, P)

    xp = patchify(x, patch).astype(jnp.float32)   # (B, Np, P)

    # --- kernel 1: patch embed (+ Normalize + CLS + pos) ---------------------
    def shared1(a):
        return pl.BlockSpec(a.shape, lambda b, _n=a.ndim: (0,) * _n)

    tok = pl.pallas_call(
        patch_embed_kernel,
        out_shape=jax.ShapeDtypeStruct((B, N, dim), jnp.float32),
        grid=(B,),
        in_specs=[pl.BlockSpec((1, Np, P), lambda b: (b, 0, 0)),
                  shared1(mean), shared1(inv_std),
                  shared1(params["patch_w"]), shared1(params["patch_b"]),
                  shared1(params["cls"]), shared1(params["pos"])],
        out_specs=pl.BlockSpec((1, N, dim), lambda b: (b, 0, 0)),
        compiler_params=pltpu.CompilerParams(dimension_semantics=("parallel",)),
    )(xp, mean, inv_std, params["patch_w"], params["patch_b"],
      params["cls"], params["pos"])

    # --- kernel 2: all transformer blocks + final LN + CLS readout, fused ----
    stacked = [jnp.stack([blk[name] for blk in params["blocks"]], axis=0)
               for name in WEIGHT_NAMES]

    def depth_spec(a):
        rest = a.shape[1:]
        return pl.BlockSpec((1,) + rest,
                            lambda b, l, _n=len(rest): (l,) + (0,) * _n)

    def shared2(a):
        return pl.BlockSpec(a.shape, lambda b, l, _n=a.ndim: (0,) * _n)

    kern = functools.partial(blocks_kernel, dim=dim, num_heads=heads)
    emb = pl.pallas_call(
        kern,
        out_shape=jax.ShapeDtypeStruct((B, 1, dim), jnp.float32),
        grid=(B, depth),
        in_specs=[pl.BlockSpec((1, N, dim), lambda b, l: (b, 0, 0))]
                 + [depth_spec(a) for a in stacked]
                 + [shared2(params["ln_f_w"]), shared2(params["ln_f_b"])],
        out_specs=pl.BlockSpec((1, 1, dim), lambda b, l: (b, 0, 0)),
        scratch_shapes=[pltpu.VMEM((N, dim), jnp.float32)],
        compiler_params=pltpu.CompilerParams(
            dimension_semantics=("parallel", "arbitrary")),
    )(tok, *stacked, params["ln_f_w"], params["ln_f_b"])

    return emb   # (B, 1, emb_dim)  == emb.unsqueeze(1) in the PyTorch module


# ----------------------------- main ------------------------------------------
if __name__ == "__main__":
    key = jax.random.PRNGKey(0)
    kx, kp = jax.random.split(key)

    B, C, H, W = 2, 3, 16, 16
    x = jax.random.uniform(kx, (B, C, H, W), dtype=jnp.float32)

    n_tokens = (H // PATCH) * (W // PATCH) + 1
    params = init_params(kp, C=C, patch=PATCH, dim=DIM, depth=DEPTH,
                         heads=HEADS, mlp=MLP, n_tokens=n_tokens)

    emb = jax.block_until_ready(vc1_forward(x, params))

    assert emb.shape == (B, 1, DIM), emb.shape
    assert bool(jnp.all(jnp.isfinite(emb)))
    print("KERNEL_OK")
</pallas_src>

<mosaic_0001>
module attributes {stable_mosaic.version = 11 : i64} {
  func.func @patch_embed_kernel(%arg0: i32, %arg1: memref<1x4x192xf32, #tpu.memory_space<vmem>>, %arg2: memref<1x192xf32, #tpu.memory_space<vmem>>, %arg3: memref<1x192xf32, #tpu.memory_space<vmem>>, %arg4: memref<192x256xbf16, #tpu.memory_space<vmem>>, %arg5: memref<1x256xf32, #tpu.memory_space<vmem>>, %arg6: memref<1x256xf32, #tpu.memory_space<vmem>>, %arg7: memref<1x5x256xf32, #tpu.memory_space<vmem>>, %arg8: memref<1x5x256xf32, #tpu.memory_space<vmem>>) attributes {dimension_semantics = [#tpu.dimension_semantics<parallel>], iteration_bounds = array<i64: 2>, scalar_prefetch = 0 : i64, scratch_operands = 0 : i64, tpu.core_type = #tpu.core_type<tc>, window_params = [{transform_indices = @transform_0, window_bounds = array<i64: 1, 4, 192>}, {pipeline_mode = #tpu.pipeline_mode<synchronous>, transform_indices = @transform_1, window_bounds = array<i64: 1, 192>}, {pipeline_mode = #tpu.pipeline_mode<synchronous>, transform_indices = @transform_2, window_bounds = array<i64: 1, 192>}, {pipeline_mode = #tpu.pipeline_mode<synchronous>, transform_indices = @transform_3, window_bounds = array<i64: 192, 256>}, {pipeline_mode = #tpu.pipeline_mode<synchronous>, transform_indices = @transform_4, window_bounds = array<i64: 1, 256>}, {pipeline_mode = #tpu.pipeline_mode<synchronous>, transform_indices = @transform_5, window_bounds = array<i64: 1, 256>}, {pipeline_mode = #tpu.pipeline_mode<synchronous>, transform_indices = @transform_6, window_bounds = array<i64: 1, 5, 256>}, {transform_indices = @transform_7, window_bounds = array<i64: 1, 5, 256>}]} {
    %c0 = arith.constant 0 : index
    %c0_0 = arith.constant 0 : index
    %c0_1 = arith.constant 0 : index
    %0 = vector.load %arg1[%c0, %c0_0, %c0_1] : memref<1x4x192xf32, #tpu.memory_space<vmem>>, vector<1x4x192xf32>
    %1 = vector.shape_cast %0 : vector<1x4x192xf32> to vector<4x192xf32>
    %c0_2 = arith.constant 0 : index
    %c0_3 = arith.constant 0 : index
    %2 = vector.load %arg2[%c0_2, %c0_3] : memref<1x192xf32, #tpu.memory_space<vmem>>, vector<1x192xf32>
    %3 = vector.broadcast %2 : vector<1x192xf32> to vector<4x192xf32>
    %4 = arith.subf %1, %3 : vector<4x192xf32>
    %c0_4 = arith.constant 0 : index
    %c0_5 = arith.constant 0 : index
    %5 = vector.load %arg3[%c0_4, %c0_5] : memref<1x192xf32, #tpu.memory_space<vmem>>, vector<1x192xf32>
    %6 = vector.broadcast %5 : vector<1x192xf32> to vector<4x192xf32>
    %7 = arith.mulf %4, %6 : vector<4x192xf32>
    %8 = arith.truncf %7 : vector<4x192xf32> to vector<4x192xbf16>
    %c0_6 = arith.constant 0 : index
    %c0_7 = arith.constant 0 : index
    %9 = vector.load %arg4[%c0_6, %c0_7] : memref<192x256xbf16, #tpu.memory_space<vmem>>, vector<192x256xbf16>
    %cst = arith.constant dense<0.000000e+00> : vector<4x256xf32>
    %10 = tpu.matmul %8, %9, %cst {dimension_numbers = #tpu.dot_dimension_numbers<[1], [0], [0], [1], [0, 0, 1, 1], [], []>} : vector<4x192xbf16>, vector<192x256xbf16>, vector<4x256xf32> -> vector<4x256xf32>
    %c0_8 = arith.constant 0 : index
    %c0_9 = arith.constant 0 : index
    %11 = vector.load %arg5[%c0_8, %c0_9] : memref<1x256xf32, #tpu.memory_space<vmem>>, vector<1x256xf32>
    %12 = vector.broadcast %11 : vector<1x256xf32> to vector<4x256xf32>
    %13 = arith.addf %10, %12 : vector<4x256xf32>
    %c0_10 = arith.constant 0 : index
    %c0_11 = arith.constant 0 : index
    %14 = vector.load %arg6[%c0_10, %c0_11] : memref<1x256xf32, #tpu.memory_space<vmem>>, vector<1x256xf32>
    %15 = tpu.concatenate %14, %13 in 0 : vector<1x256xf32>, vector<4x256xf32> -> vector<5x256xf32>
    %c0_12 = arith.constant 0 : index
    %c0_13 = arith.constant 0 : index
    %c0_14 = arith.constant 0 : index
    %16 = vector.load %arg7[%c0_12, %c0_13, %c0_14] : memref<1x5x256xf32, #tpu.memory_space<vmem>>, vector<1x5x256xf32>
    %17 = vector.shape_cast %16 : vector<1x5x256xf32> to vector<5x256xf32>
    %18 = arith.addf %15, %17 : vector<5x256xf32>
    %c0_15 = arith.constant 0 : index
    %c0_16 = arith.constant 0 : index
    %c0_17 = arith.constant 0 : index
    %19 = vector.load %arg8[%c0_15, %c0_16, %c0_17] : memref<1x5x256xf32, #tpu.memory_space<vmem>>, vector<1x5x256xf32>
    %20 = vector.shape_cast %19 : vector<1x5x256xf32> to vector<5x256xf32>
    %21 = vector.shape_cast %18 : vector<5x256xf32> to vector<1x5x256xf32>
    tpu.vector_store %arg8[%c0_15, %c0_16, %c0_17], %21 {strides = array<i32>} : memref<1x5x256xf32, #tpu.memory_space<vmem>>, vector<1x5x256xf32>,
    return
  }
  func.func @transform_0(%arg0: i32) -> (i32, i32, i32) {
    %c0_i32 = arith.constant 0 : i32
    %c0_i32_0 = arith.constant 0 : i32
    %c0_i32_1 = arith.constant 0 : i32
    return %arg0, %c0_i32, %c0_i32_0 : i32, i32, i32
  }
  func.func @transform_1(%arg0: i32) -> (i32, i32) {
    %c0_i32 = arith.constant 0 : i32
    %c0_i32_0 = arith.constant 0 : i32
    %c0_i32_1 = arith.constant 0 : i32
    return %c0_i32, %c0_i32_0 : i32, i32
  }
  func.func @transform_2(%arg0: i32) -> (i32, i32) {
    %c0_i32 = arith.constant 0 : i32
    %c0_i32_0 = arith.constant 0 : i32
    %c0_i32_1 = arith.constant 0 : i32
    return %c0_i32, %c0_i32_0 : i32, i32
  }
  func.func @transform_3(%arg0: i32) -> (i32, i32) {
    %c0_i32 = arith.constant 0 : i32
    %c0_i32_0 = arith.constant 0 : i32
    %c0_i32_1 = arith.constant 0 : i32
    return %c0_i32, %c0_i32_0 : i32, i32
  }
  func.func @transform_4(%arg0: i32) -> (i32, i32) {
    %c0_i32 = arith.constant 0 : i32
    %c0_i32_0 = arith.constant 0 : i32
    %c0_i32_1 = arith.constant 0 : i32
    return %c0_i32, %c0_i32_0 : i32, i32
  }
  func.func @transform_5(%arg0: i32) -> (i32, i32) {
    %c0_i32 = arith.constant 0 : i32
    %c0_i32_0 = arith.constant 0 : i32
    %c0_i32_1 = arith.constant 0 : i32
    return %c0_i32, %c0_i32_0 : i32, i32
  }
  func.func @transform_6(%arg0: i32) -> (i32, i32, i32) {
    %c0_i32 = arith.constant 0 : i32
    %c0_i32_0 = arith.constant 0 : i32
    %c0_i32_1 = arith.constant 0 : i32
    %c0_i32_2 = arith.constant 0 : i32
    return %c0_i32, %c0_i32_0, %c0_i32_1 : i32, i32, i32
  }
  func.func @transform_7(%arg0: i32) -> (i32, i32, i32) {
    %c0_i32 = arith.constant 0 : i32
    %c0_i32_0 = arith.constant 0 : i32
    %c0_i32_1 = arith.constant 0 : i32
    return %arg0, %c0_i32, %c0_i32_0 : i32, i32, i32
  }
}

</mosaic_0001>

<llo_original>
// kernel: tpu_custom_call.1
$region0: #{tpu_custom_call.1}
  #allocation0 [shape = 'u32[]', space=smem, size = 0x4, offset = 0x4, fixed_abs, tag = 'smem constant byte address 0x4 - core index']
  #allocation1 [shape = 'u32[144,128]{1,0:T(1,128)}', space=vmem, size = 0x12000, scoped, tag = 'internal scratch']
  %s0 = inlined_call_operand.vmem [shape: f32[2,4,192], index: 0, kind: input, shape index: {}]
  %s1 = inlined_call_operand.vmem [shape: f32[1,192], index: 1, kind: input, shape index: {}]
  %s2 = inlined_call_operand.vmem [shape: f32[1,192], index: 2, kind: input, shape index: {}]
  %s3 = inlined_call_operand.hbm [shape: bf16[192,256], index: 3, kind: input, shape index: {}]
  %s4 = inlined_call_operand.vmem [shape: f32[1,256], index: 4, kind: input, shape index: {}]
  %s5 = inlined_call_operand.vmem [shape: f32[1,256], index: 5, kind: input, shape index: {}]
  %s6 = inlined_call_operand.vmem [shape: f32[1,5,256], index: 6, kind: input, shape index: {}]
  %s7 = inlined_call_operand.vmem [shape: f32[2,5,256], index: 7, kind: output, shape index: {}]
  %s8 = sld [smem:[#allocation0]]
  $region65: #{tpu_custom_call.1} parent=0
    _
  %s10 = ssub.s32 1, %s8
  %s11 = scalar_select 0, %s10, %s8
  $region1: #{tpu_custom_call.1} parent=0
    #allocation2 [shape = 'u8[98304]{0}', space=vmem, size = 0x18000, scoped, tag = 'input window, operand 3, single buffered']
    #allocation3 [shape = 's32[2]{0}', space=sflag, size = 0x8, scoped, tag = 'scoped memory for tpu_custom_call.1']
    %12 = vsyncpa [#allocation3], 0
    loop: start=0, step=1, limit=4
    $region2: #{tpu_custom_call.1} parent=1 // loop_pre_header
      _
    $region3: #{tpu_custom_call.1} parent=1 // loop_header
      %s14 = sphi 0, %s18
      %p15 = scmp.ge.s32.totalorder %s14, 4
      %s24 = sphi 0, %s26
      %s27 = sphi 0, %s24
      %s28 = sphi 0, %s27
      %s44 = sphi 0, %s28
      %s48 = sphi 0, %s48
      %s50 = sphi 0, %s48
      %s51 = sphi 0, %s50
      %s65 = sphi 0, %s51
      %s69 = sphi 0, %s69
      %s71 = sphi 0, %s69
      %s72 = sphi 0, %s71
      %s86 = sphi 0, %s72
      %s90 = sphi 0, %s90
      %s92 = sphi 0, %s90
      %s93 = sphi 0, %s92
      %s107 = sphi 0, %s93
      %s111 = sphi 0, %s111
      %s113 = sphi 0, %s111
      %s114 = sphi 0, %s113
      %s128 = sphi 0, %s114
      %s132 = sphi 0, %s132
      %s134 = sphi 0, %s132
      %s135 = sphi 0, %s134
      %s149 = sphi 0, %s135
      %s153 = sphi 0, %s153
      %s155 = sphi 0, %s153
      %s156 = sphi 0, %s155
      %s170 = sphi 0, %s156
      %s176 = sphi 0, %s178
      %s179 = sphi 0, %s176
      %s180 = sphi 0, %s179
      %s196 = sphi 0, %s180
    $region4: #{tpu_custom_call.1} parent=1 // loop_header_branch
      %17 = sbr.rel (%p15) target = $region8
    $region5: #{tpu_custom_call.1} parent=1 // loop_body
      %s19 = ssub.s32 %s14, 1
      %s20 = ssub.s32 %s14, 2
      %s21 = sadd.s32 %s14, 1
      %s22 = ssub.s32 %s14, %s21
      %p23 = scmp.eq.s32.totalorder %s22, 0
      %s25 = sadd.s32 %s24, 1
      %s26 = scalar_select %p23, %s24, %s25
      %p29 = pneg %p23
      %p30 = scmp.eq.s32.totalorder %s14, 1
      %p31 = por %p29, %p30
      %p32 = scmp.ne.s32.totalorder %s24, %s27
      %p33 = scmp.eq.s32.totalorder %s14, 0
      %p34 = por %p32, %p33
      %p35 = scmp.ne.s32.totalorder %s24, %s27
      %p36 = scmp.eq.s32.totalorder %s19, 1
      %p37 = por %p35, %p36
      %p38 = scmp.ne.s32.totalorder %s27, %s28
      %p39 = scmp.eq.s32.totalorder %s19, 0
      %p40 = por %p38, %p39
      %p41 = scmp.ne.s32.totalorder %s27, %s28
      %p42 = scmp.eq.s32.totalorder %s20, 1
      %p43 = por %p41, %p42
      %p45 = scmp.ne.s32.totalorder %s28, %s44
      %p46 = scmp.eq.s32.totalorder %s20, 0
      %p47 = por %p45, %p46
      %s49 = sadd.s32 %s48, 1
      %p52 = scmp.eq.s32.totalorder %s14, 1
      %p53 = scmp.ne.s32.totalorder %s48, %s50
      %p54 = scmp.eq.s32.totalorder %s14, 0
      %p55 = por %p53, %p54
      %p56 = scmp.ne.s32.totalorder %s48, %s50
      %p57 = scmp.eq.s32.totalorder %s19, 1
      %p58 = por %p56, %p57
      %p59 = scmp.ne.s32.totalorder %s50, %s51
      %p60 = scmp.eq.s32.totalorder %s19, 0
      %p61 = por %p59, %p60
      %p62 = scmp.ne.s32.totalorder %s50, %s51
      %p63 = scmp.eq.s32.totalorder %s20, 1
      %p64 = por %p62, %p63
      %p66 = scmp.ne.s32.totalorder %s51, %s65
      %p67 = scmp.eq.s32.totalorder %s20, 0
      %p68 = por %p66, %p67
      %s70 = sadd.s32 %s69, 1
      %p73 = scmp.eq.s32.totalorder %s14, 1
      %p74 = scmp.ne.s32.totalorder %s69, %s71
      %p75 = scmp.eq.s32.totalorder %s14, 0
      %p76 = por %p74, %p75
      %p77 = scmp.ne.s32.totalorder %s69, %s71
      %p78 = scmp.eq.s32.totalorder %s19, 1
      %p79 = por %p77, %p78
      %p80 = scmp.ne.s32.totalorder %s71, %s72
      %p81 = scmp.eq.s32.totalorder %s19, 0
      %p82 = por %p80, %p81
      %p83 = scmp.ne.s32.totalorder %s71, %s72
      %p84 = scmp.eq.s32.totalorder %s20, 1
      %p85 = por %p83, %p84
      %p87 = scmp.ne.s32.totalorder %s72, %s86
      %p88 = scmp.eq.s32.totalorder %s20, 0
      %p89 = por %p87, %p88
      %s91 = sadd.s32 %s90, 1
      %p94 = scmp.eq.s32.totalorder %s14, 1
      %p95 = scmp.ne.s32.totalorder %s90, %s92
      %p96 = scmp.eq.s32.totalorder %s14, 0
      %p97 = por %p95, %p96
      %p98 = scmp.ne.s32.totalorder %s90, %s92
      %p99 = scmp.eq.s32.totalorder %s19, 1
      %p100 = por %p98, %p99
      %p101 = scmp.ne.s32.totalorder %s92, %s93
      %p102 = scmp.eq.s32.totalorder %s19, 0
      %p103 = por %p101, %p102
      %p104 = scmp.ne.s32.totalorder %s92, %s93
      %p105 = scmp.eq.s32.totalorder %s20, 1
      %p106 = por %p104, %p105
      %p108 = scmp.ne.s32.totalorder %s93, %s107
      %p109 = scmp.eq.s32.totalorder %s20, 0
      %p110 = por %p108, %p109
      %s112 = sadd.s32 %s111, 1
      %p115 = scmp.eq.s32.totalorder %s14, 1
      %p116 = scmp.ne.s32.totalorder %s111, %s113
      %p117 = scmp.eq.s32.totalorder %s14, 0
      %p118 = por %p116, %p117
      %p119 = scmp.ne.s32.totalorder %s111, %s113
      %p120 = scmp.eq.s32.totalorder %s19, 1
      %p121 = por %p119, %p120
      %p122 = scmp.ne.s32.totalorder %s113, %s114
      %p123 = scmp.eq.s32.totalorder %s19, 0
      %p124 = por %p122, %p123
      %p125 = scmp.ne.s32.totalorder %s113, %s114
      %p126 = scmp.eq.s32.totalorder %s20, 1
      %p127 = por %p125, %p126
      %p129 = scmp.ne.s32.totalorder %s114, %s128
      %p130 = scmp.eq.s32.totalorder %s20, 0
      %p131 = por %p129, %p130
      %s133 = sadd.s32 %s132, 1
      %p136 = scmp.eq.s32.totalorder %s14, 1
      %p137 = scmp.ne.s32.totalorder %s132, %s134
      %p138 = scmp.eq.s32.totalorder %s14, 0
      %p139 = por %p137, %p138
      %p140 = scmp.ne.s32.totalorder %s132, %s134
      %p141 = scmp.eq.s32.totalorder %s19, 1
      %p142 = por %p140, %p141
      %p143 = scmp.ne.s32.totalorder %s134, %s135
      %p144 = scmp.eq.s32.totalorder %s19, 0
      %p145 = por %p143, %p144
      %p146 = scmp.ne.s32.totalorder %s134, %s135
      %p147 = scmp.eq.s32.totalorder %s20, 1
      %p148 = por %p146, %p147
      %p150 = scmp.ne.s32.totalorder %s135, %s149
      %p151 = scmp.eq.s32.totalorder %s20, 0
      %p152 = por %p150, %p151
      %s154 = sadd.s32 %s153, 1
      %p157 = scmp.eq.s32.totalorder %s14, 1
      %p158 = scmp.ne.s32.totalorder %s153, %s155
      %p159 = scmp.eq.s32.totalorder %s14, 0
      %p160 = por %p158, %p159
      %p161 = scmp.ne.s32.totalorder %s153, %s155
      %p162 = scmp.eq.s32.totalorder %s19, 1
      %p163 = por %p161, %p162
      %p164 = scmp.ne.s32.totalorder %s155, %s156
      %p165 = scmp.eq.s32.totalorder %s19, 0
      %p166 = por %p164, %p165
      %p167 = scmp.ne.s32.totalorder %s155, %s156
      %p168 = scmp.eq.s32.totalorder %s20, 1
      %p169 = por %p167, %p168
      %p171 = scmp.ne.s32.totalorder %s156, %s170
      %p172 = scmp.eq.s32.totalorder %s20, 0
      %p173 = por %p171, %p172
      %s174 = ssub.s32 %s14, %s21
      %p175 = scmp.eq.s32.totalorder %s174, 0
      %s177 = sadd.s32 %s176, 1
      %s178 = scalar_select %p175, %s176, %s177
      %p181 = pneg %p175
      %p182 = scmp.eq.s32.totalorder %s14, 1
      %p183 = por %p181, %p182
      %p184 = scmp.ne.s32.totalorder %s176, %s179
      %p185 = scmp.eq.s32.totalorder %s14, 0
      %p186 = por %p184, %p185
      %p187 = scmp.ne.s32.totalorder %s176, %s179
      %p188 = scmp.eq.s32.totalorder %s19, 1
      %p189 = por %p187, %p188
      %p190 = scmp.ne.s32.totalorder %s179, %s180
      %p191 = scmp.eq.s32.totalorder %s19, 0
      %p192 = por %p190, %p191
      %p193 = scmp.ne.s32.totalorder %s179, %s180
      %p194 = scmp.eq.s32.totalorder %s20, 1
      %p195 = por %p193, %p194
      %p197 = scmp.ne.s32.totalorder %s180, %s196
      %p198 = scmp.eq.s32.totalorder %s20, 0
      %p199 = por %p197, %p198
      %p200 = scmp.le.s32.totalorder 1, %s14
      %p201 = scmp.lt.s32.totalorder %s14, 3
      %p202 = pnand %p200, %p201
      %p203 = pneg %p202
      // Predicated region
      $region9: #{tpu_custom_call.1} parent=5 // pred_check
        _
      $region10: #{tpu_custom_call.1} parent=5 // pred_check_branch
        %205 = sbr.rel (%p202) target = $region12
      $region11: #{tpu_custom_call.1} parent=5 // pred_region
        %s206 = ssub.s32 %s14, 1
        // Predicated region
        $region13: #{tpu_custom_call.1} parent=11 // pred_check
          %p207 = pneg %p61
        $region14: #{tpu_custom_call.1} parent=11 // pred_check_branch
          %209 = sbr.rel (%p207) target = $region16
        $region15: #{tpu_custom_call.1} parent=11 // pred_region
          _
        $region16: #{tpu_custom_call.1} parent=11 // pred_fallthru
          _
        // Predicated region
        $region17: #{tpu_custom_call.1} parent=11 // pred_check
          %p210 = pneg %p82
        $region18: #{tpu_custom_call.1} parent=11 // pred_check_branch
          %212 = sbr.rel (%p210) target = $region20
        $region19: #{tpu_custom_call.1} parent=11 // pred_region
          _
        $region20: #{tpu_custom_call.1} parent=11 // pred_fallthru
          _
        // Predicated region
        $region21: #{tpu_custom_call.1} parent=11 // pred_check
          %p213 = pneg %p103
        $region22: #{tpu_custom_call.1} parent=11 // pred_check_branch
          %215 = sbr.rel (%p213) target = $region24
        $region23: #{tpu_custom_call.1} parent=11 // pred_region
          %s217 = ssub.s32 3072, 3072
          %218 = vsyncadd [#allocation3], %s217
          %s219 = sshll.u32 [#allocation2], 4
          %s220 = int_to_ptr.vmem [resolvable:$true] %s219
          %225 = dma.hbm_to_vmem [thread:$0]  %s3, 3072, %s220, [#allocation3], 128, 128, 8
        $region24: #{tpu_custom_call.1} parent=11 // pred_fallthru
          _
        // Predicated region
        $region25: #{tpu_custom_call.1} parent=11 // pred_check
          %p226 = pneg %p124
        $region26: #{tpu_custom_call.1} parent=11 // pred_check_branch
          %228 = sbr.rel (%p226) target = $region28
        $region27: #{tpu_custom_call.1} parent=11 // pred_region
          _
        $region28: #{tpu_custom_call.1} parent=11 // pred_fallthru
          _
        // Predicated region
        $region29: #{tpu_custom_call.1} parent=11 // pred_check
          %p229 = pneg %p145
        $region30: #{tpu_custom_call.1} parent=11 // pred_check_branch
          %231 = sbr.rel (%p229) target = $region32
        $region31: #{tpu_custom_call.1} parent=11 // pred_region
          _
        $region32: #{tpu_custom_call.1} parent=11 // pred_fallthru
          _
        // Predicated region
        $region33: #{tpu_custom_call.1} parent=11 // pred_check
          %p232 = pneg %p166
        $region34: #{tpu_custom_call.1} parent=11 // pred_check_branch
          %234 = sbr.rel (%p232) target = $region36
        $region35: #{tpu_custom_call.1} parent=11 // pred_region
          _
        $region36: #{tpu_custom_call.1} parent=11 // pred_fallthru
          _
      $region12: #{tpu_custom_call.1} parent=5 // pred_fallthru
        _
      %p235 = scmp.lt.s32.totalorder %s14, 2
      // Predicated region
      $region37: #{tpu_custom_call.1} parent=5 // pred_check
        %p236 = pneg %p235
      $region38: #{tpu_custom_call.1} parent=5 // pred_check_branch
        %238 = sbr.rel (%p236) target = $region40
      $region39: #{tpu_custom_call.1} parent=5 // pred_region
        // Predicated region
        $region41: #{tpu_custom_call.1} parent=39 // pred_check
          %p239 = pneg %p34
        $region42: #{tpu_custom_call.1} parent=39 // pred_check_branch
          %241 = sbr.rel (%p239) target = $region44
        $region43: #{tpu_custom_call.1} parent=39 // pred_region
          %p242 = scmp.lt.s32.totalorder %s14, 1
          %s243 = scalar_select %p242, %s14, 1
          %s244 = smul.addr %s243, 2
          %s245 = smul.addr %s244, 4
          %s246 = scalar_lea.vmem %s0, %s245
        $region44: #{tpu_custom_call.1} parent=39 // pred_fallthru
          _
      $region40: #{tpu_custom_call.1} parent=5 // pred_fallthru
        _
      %p247 = scmp.le.s32.totalorder 1, %s14
      %p248 = scmp.lt.s32.totalorder %s14, 3
      %p249 = pnand %p247, %p248
      %p250 = pneg %p249
      // Predicated region
      $region45: #{tpu_custom_call.1} parent=5 // pred_check
        _
      $region46: #{tpu_custom_call.1} parent=5 // pred_check_branch
        %252 = sbr.rel (%p249) target = $region48
      $region47: #{tpu_custom_call.1} parent=5 // pred_region
        %s253 = ssub.s32 %s14, 1
        // Predicated region
        $region49: #{tpu_custom_call.1} parent=47 // pred_check
          %p254 = pneg %p103
        $region50: #{tpu_custom_call.1} parent=47 // pred_check_branch
          %256 = sbr.rel (%p254) target = $region52
        $region51: #{tpu_custom_call.1} parent=47 // pred_region
          %257 = dma.done [#allocation3], 3072
        $region52: #{tpu_custom_call.1} parent=47 // pred_fallthru
          _
        %p258 = scmp.lt.s32.totalorder %s19, 1
        %s259 = scalar_select %p258, %s19, 1
        %s260 = smul.addr %s259, 2
        %s261 = smul.addr %s260, 4
        %s262 = scalar_lea.vmem %s0, %s261
        %p263 = pneg %p40
        %p264 = pneg %p37
        %p265 = pneg %p61
        %p266 = pneg %p58
        %p267 = pneg %p82
        %p268 = pneg %p79
        %p269 = pneg %p103
        %p270 = pneg %p100
        %p271 = pneg %p124
        %p272 = pneg %p121
        %p273 = pneg %p145
        %p274 = pneg %p142
        %p275 = pneg %p166
        %p276 = pneg %p163
        %p277 = pneg %p192
        %p278 = pneg %p189
        %p279 = scmp.lt.s32.totalorder %s19, 1
        %s280 = scalar_select %p279, %s19, 1
        %s281 = smul.addr %s280, 2
        %s282 = smul.addr %s281, 8
        %s283 = scalar_lea.vmem %s7, %s282
        %p284 = scmp.lt.s32.totalorder %s19, 1
        %s285 = scalar_select %p284, %s19, 1
        %s286 = smul.addr %s285, 2
        %s287 = smul.addr %s286, 4
        %s288 = scalar_lea.vmem %s0, %s287
        %p289 = scmp.lt.s32.totalorder %s19, 1
        %s290 = scalar_select %p289, %s19, 1
        %s291 = smul.addr %s290, 2
        %s292 = smul.addr %s291, 8
        %s293 = scalar_lea.vmem %s7, %s292
        %v295 = vld [vmem:[%s288] sm:$0xff]
        %v296 = vld [vmem:[%s1] sm:$0x3]
        %v298 = vlaneseq
        %v299 = vshrl.u32 %v298, 7
        %v300 = vsub.s32 0, %v299
        %v301 = vrot.slane %v296, %v300
        %v302 = vlaneseq
        %v303 = vshrl.u32 %v302, 7
        %v304 = vsub.s32 1, %v303
        %v305 = vrot.slane %v296, %v304
        %v306 = vcombine.low %v301, %v305
        %v308 = vsub.f32 %v295, %v306
        %v309 = vld [vmem:[%s2] sm:$0x3]
        %v311 = vlaneseq
        %v312 = vshrl.u32 %v311, 7
        %v313 = vsub.s32 0, %v312
        %v314 = vrot.slane %v309, %v313
        %v315 = vlaneseq
        %v316 = vshrl.u32 %v315, 7
        %v317 = vsub.s32 1, %v316
        %v318 = vrot.slane %v309, %v317
        %v319 = vcombine.low %v314, %v318
        %v321 = vmul.f32 %v308, %v319
        %v323 = vcombine.high %v321, %v321
        %v325 = vpack.c.bf16 %v321, %v321
        %v326 = vpack.c.bf16 %v323, %v323
        %v327 = vld [vmem:[#allocation2] sm:$0xff]
        %v328 = vld [vmem:[#allocation2 + $0x8] sm:$0xff]
        %v329 = vld [vmem:[#allocation2 + $0x10] sm:$0xff]
        %v330 = vld [vmem:[#allocation2 + $0x18] sm:$0xff]
        %v331 = vld [vmem:[#allocation2 + $0x20] sm:$0xff]
        %v332 = vld [vmem:[#allocation2 + $0x28] sm:$0xff]
        %v333 = vld [vmem:[#allocation2 + $0x30] sm:$0xff]
        %v334 = vld [vmem:[#allocation2 + $0x38] sm:$0xff]
        %v335 = vld [vmem:[#allocation2 + $0x40] sm:$0xff]
        %v336 = vld [vmem:[#allocation2 + $0x48] sm:$0xff]
        %v337 = vld [vmem:[#allocation2 + $0x50] sm:$0xff]
        %v338 = vld [vmem:[#allocation2 + $0x58] sm:$0xff]
        %v339 = vld [vmem:[#allocation2 + $0x60] sm:$0xff]
        %v340 = vld [vmem:[#allocation2 + $0x68] sm:$0xff]
        %v341 = vld [vmem:[#allocation2 + $0x70] sm:$0xff]
        %v342 = vld [vmem:[#allocation2 + $0x78] sm:$0xff]
        %v343 = vld [vmem:[#allocation2 + $0x80] sm:$0xff]
        %v344 = vld [vmem:[#allocation2 + $0x88] sm:$0xff]
        %v345 = vld [vmem:[#allocation2 + $0x90] sm:$0xff]
        %v346 = vld [vmem:[#allocation2 + $0x98] sm:$0xff]
        %v347 = vld [vmem:[#allocation2 + $0xa0] sm:$0xff]
        %v348 = vld [vmem:[#allocation2 + $0xa8] sm:$0xff]
        %v349 = vld [vmem:[#allocation2 + $0xb0] sm:$0xff]
        %v350 = vld [vmem:[#allocation2 + $0xb8] sm:$0xff]
        %v351 = vld [vmem:[%s4] sm:$0x3]
        %v353 = vlaneseq
        %v354 = vshrl.u32 %v353, 7
        %v355 = vsub.s32 0, %v354
        %v356 = vrot.slane %v351, %v355
        %v357 = vlaneseq
        %v358 = vshrl.u32 %v357, 7
        %v359 = vsub.s32 1, %v358
        %v360 = vrot.slane %v351, %v359
        %v387 = vunpack.c.l.b16 %v327
        %v388 = vunpack.c.h.b16 %v327
        %v389 = vunpack.c.l.b16 %v328
        %v390 = vunpack.c.h.b16 %v328
        %v391 = vunpack.c.l.b16 %v329
        %v392 = vunpack.c.h.b16 %v329
        %v393 = vunpack.c.l.b16 %v330
        %v394 = vunpack.c.h.b16 %v330
        %v395 = vunpack.c.l.b16 %v331
        %v396 = vunpack.c.h.b16 %v331
        %v397 = vunpack.c.l.b16 %v332
        %v398 = vunpack.c.h.b16 %v332
        %v399 = vunpack.c.l.b16 %v333
        %v400 = vunpack.c.h.b16 %v333
        %v401 = vunpack.c.l.b16 %v334
        %v402 = vunpack.c.h.b16 %v334
        %v403 = vunpack.c.l.b16 %v335
        %v404 = vunpack.c.h.b16 %v335
        %v405 = vunpack.c.l.b16 %v336
        %v406 = vunpack.c.h.b16 %v336
        %v407 = vunpack.c.l.b16 %v337
        %v408 = vunpack.c.h.b16 %v337
        %v409 = vunpack.c.l.b16 %v338
        %v410 = vunpack.c.h.b16 %v338
        %v411 = vunpack.c.l.b16 %v339
        %v412 = vunpack.c.h.b16 %v339
        %v413 = vunpack.c.l.b16 %v340
        %v414 = vunpack.c.h.b16 %v340
        %v415 = vunpack.c.l.b16 %v341
        %v416 = vunpack.c.h.b16 %v341
        %v417 = vunpack.c.l.b16 %v342
        %v418 = vunpack.c.h.b16 %v342
        %v419 = vunpack.c.l.b16 %v343
        %v420 = vunpack.c.h.b16 %v343
        %v421 = vunpack.c.l.b16 %v344
        %v422 = vunpack.c.h.b16 %v344
        %v423 = vunpack.c.l.b16 %v345
        %v424 = vunpack.c.h.b16 %v345
        %v425 = vunpack.c.l.b16 %v346
        %v426 = vunpack.c.h.b16 %v346
        %v427 = vunpack.c.l.b16 %v347
        %v428 = vunpack.c.h.b16 %v347
        %v429 = vunpack.c.l.b16 %v348
        %v430 = vunpack.c.h.b16 %v348
        %v431 = vunpack.c.l.b16 %v349
        %v432 = vunpack.c.h.b16 %v349
        %v433 = vunpack.c.l.b16 %v350
        %v434 = vunpack.c.h.b16 %v350
        %v435 = vpack.c.b16 %v389, %v387
        %v436 = vpack.c.b16 %v390, %v388
        %v437 = vpack.c.b16 %v393, %v391
        %v438 = vpack.c.b16 %v394, %v392
        %v439 = vpack.c.b16 %v397, %v395
        %v440 = vpack.c.b16 %v398, %v396
        %v441 = vpack.c.b16 %v401, %v399
        %v442 = vpack.c.b16 %v402, %v400
        %v443 = vpack.c.b16 %v405, %v403
        %v444 = vpack.c.b16 %v406, %v404
        %v445 = vpack.c.b16 %v409, %v407
        %v446 = vpack.c.b16 %v410, %v408
        %v447 = vpack.c.b16 %v413, %v411
        %v448 = vpack.c.b16 %v414, %v412
        %v449 = vpack.c.b16 %v417, %v415
        %v450 = vpack.c.b16 %v418, %v416
        %v451 = vpack.c.b16 %v421, %v419
        %v452 = vpack.c.b16 %v422, %v420
        %v453 = vpack.c.b16 %v425, %v423
        %v454 = vpack.c.b16 %v426, %v424
        %v455 = vpack.c.b16 %v429, %v427
        %v456 = vpack.c.b16 %v430, %v428
        %v457 = vpack.c.b16 %v433, %v431
        %v458 = vpack.c.b16 %v434, %v432
        %vm483 = vcmask 523264
        %v485 = vsel %vm483, %v326, 0
        %487 = vmatprep.subr.bf16.mxu0 %v450
        %488 = vmatpush1.bf16.msra.mxu0 %v449
        %489 = vmatprep.subr.bf16.mxu0 %v448
        %490 = vmatpush1.bf16.msra.mxu0 %v447
        %491 = vmatprep.subr.bf16.mxu0 %v446
        %492 = vmatpush1.bf16.msra.mxu0 %v445
        %493 = vmatprep.subr.bf16.mxu0 %v444
        %494 = vmatpush1.bf16.msra.mxu0 %v443
        %495 = vmatprep.subr.bf16.mxu0 %v442
        %496 = vmatpush1.bf16.msra.mxu0 %v441
        %497 = vmatprep.subr.bf16.mxu0 %v440
        %498 = vmatpush1.bf16.msra.mxu0 %v439
        %499 = vmatprep.subr.bf16.mxu0 %v438
        %500 = vmatpush1.bf16.msra.mxu0 %v437
        %501 = vmatprep.subr.bf16.mxu0 %v436
        %502 = vmatpush1.bf16.msra.mxu0 %v435
        %503 = vmatprep.subr.bf16.mxu0 0
        %504 = vmatpush2.bf16.msra.mxu0 0
        %505 = vmatprep.subr.bf16.mxu0 0
        %506 = vmatpush2.bf16.msra.mxu0 0
        %507 = vmatprep.subr.bf16.mxu0 0
        %508 = vmatpush2.bf16.msra.mxu0 0
        %509 = vmatprep.subr.bf16.mxu0 0
        %510 = vmatpush2.bf16.msra.mxu0 0
        %511 = vmatprep.subr.bf16.mxu0 %v458
        %512 = vmatpush2.bf16.msra.mxu0 %v457
        %513 = vmatprep.subr.bf16.mxu0 %v456
        %514 = vmatpush2.bf16.msra.mxu0 %v455
        %515 = vmatprep.subr.bf16.mxu0 %v454
        %516 = vmatpush2.bf16.msra.mxu0 %v453
        %517 = vmatprep.subr.bf16.mxu0 %v452
        %518 = vmatpush2.bf16.msra.mxu0 %v451
        %519 = vmatprep.mubr.bf16.mxu0 %v485
        %520 = vmatmul.mubr.bf16.gmra.mxu0 %v325
        %v521 = vpop.f32.mrf.mxu0
        %v522 = vadd.f32 %v356, %v521
        %v523 = vpop.f32.mrf.mxu0
        %v524 = vadd.f32 %v360, %v523
        %v525 = vpop.f32.mrf.mxu0
        %v526 = vpop.f32.mrf.mxu0
        %527 = vdwg.mxu0
        %v528 = vld [vmem:[%s5] sm:$0x3]
        %v530 = vlaneseq
        %v531 = vshrl.u32 %v530, 7
        %v532 = vsub.s32 0, %v531
        %v533 = vrot.slane %v528, %v532
        %v534 = vlaneseq
        %v535 = vshrl.u32 %v534, 7
        %v536 = vsub.s32 1, %v535
        %v537 = vrot.slane %v528, %v536
        %v542 = vrot.slane %v522, 7
        %v543 = vrot.slane %v524, 7
        %vm546 = vcmask 1040384
        %v547 = vsel %vm546, %v533, %v542
        %v548 = vsel %vm546, %v537, %v543
        %v549 = vld [vmem:[%s6] sm:$0x1f]
        %v550 = vld [vmem:[%s6 + $0x8] sm:$0x1f]
        %v551 = vadd.f32 %v547, %v549
        %v552 = vadd.f32 %v548, %v550
        %553 = vst [vmem:[%s293] sm:$0x1f] %v551
        %554 = vst [vmem:[%s293 + $0x8] sm:$0x1f] %v552
        %p555 = scmp.lt.s32.totalorder %s19, 1
        %s556 = scalar_select %p555, %s19, 1
        %s557 = smul.addr %s556, 2
        %s558 = smul.addr %s557, 8
        %s559 = scalar_lea.vmem %s7, %s558
        // Predicated region
        $region53: #{tpu_custom_call.1} parent=47 // pred_check
          %p560 = pneg %p189
        $region54: #{tpu_custom_call.1} parent=47 // pred_check_branch
          %562 = sbr.rel (%p560) target = $region56
        $region55: #{tpu_custom_call.1} parent=47 // pred_region
          _
        $region56: #{tpu_custom_call.1} parent=47 // pred_fallthru
          _
      $region48: #{tpu_custom_call.1} parent=5 // pred_fallthru
        _
      %p563 = scmp.le.s32.totalorder 2, %s14
      // Predicated region
      $region57: #{tpu_custom_call.1} parent=5 // pred_check
        %p564 = pneg %p563
      $region58: #{tpu_custom_call.1} parent=5 // pred_check_branch
        %566 = sbr.rel (%p564) target = $region60
      $region59: #{tpu_custom_call.1} parent=5 // pred_region
        %s567 = ssub.s32 %s14, 2
        // Predicated region
        $region61: #{tpu_custom_call.1} parent=59 // pred_check
          %p568 = pneg %p195
        $region62: #{tpu_custom_call.1} parent=59 // pred_check_branch
          %570 = sbr.rel (%p568) target = $region64
        $region63: #{tpu_custom_call.1} parent=59 // pred_region
          %p571 = scmp.lt.s32.totalorder %s20, 1
          %s572 = scalar_select %p571, %s20, 1
          %s573 = smul.addr %s572, 2
          %s574 = smul.addr %s573, 8
          %s575 = scalar_lea.vmem %s7, %s574
        $region64: #{tpu_custom_call.1} parent=59 // pred_fallthru
          _
      $region60: #{tpu_custom_call.1} parent=5 // pred_fallthru
        _
    $region6: #{tpu_custom_call.1} parent=1 // loop_footer
      %s18 = sadd.s32 1, %s14
    $region7: #{tpu_custom_call.1} parent=1 // loop_footer_branch
      %13 = sbr.rel target = $region3
    $region8: #{tpu_custom_call.1} parent=1 // loop_exit
      _
    %576 = vsyncpa [#allocation3], 1
    %s577 = scalar_lea.sflag [#allocation3], 1
    %578 = vsyncpa %s577, 1

</llo_original>
